<compile_context>
chip_gen: v7x
topology: tpu7x:2x2x1
jax: 0.10.0
libtpu: 0.0.40
codegen_flags: <defaults>
</compile_context>

<pallas_src>
import functools

import jax
import jax.numpy as jnp
from jax import lax
from jax.experimental import pallas as pl
from jax.experimental.pallas import tpu as pltpu


def _round_up(x, m):
    return ((x + m - 1) // m) * m


def _conv_bn_kernel(p_ref, w_ref, scale_ref, shift_ref, o_ref):
    """One M-tile of: out = (patches @ W) * scale + shift (f32 accumulation)."""
    acc = jnp.dot(p_ref[...], w_ref[...], preferred_element_type=jnp.float32)
    o_ref[...] = (acc * scale_ref[...] + shift_ref[...]).astype(o_ref.dtype)


def conv_patch_embed(x, conv_w, conv_b, bn_gamma, bn_beta, bn_mean, bn_var,
                     *, kernel_size=3, stride=2, eps=1e-5, tile_m=512,
                     compute_dtype=jnp.bfloat16, channels_last=False):
    """Forward pass of ConvPatchEmbed.

    x:      (B, C, H, W)  float32, NCHW (matches the PyTorch module)
    conv_w: (E, C, k, k)
    conv_b, bn_*: (E,)
    returns (out, (Ho, Wo));  out is NCHW (B, E, Ho, Wo) unless channels_last.
    """
    B, C, H, W = x.shape
    E = conv_w.shape[0]
    k = kernel_size
    pad = k // 2
    Ho = (H + 2 * pad - k) // stride + 1
    Wo = (W + 2 * pad - k) // stride + 1

    K = C * k * k
    K_pad = _round_up(K, 8)      # aligned sublane rows for the weight tile
    E_pad = _round_up(E, 128)    # lane-dense output -> unmasked stores, full MXU pops

    # ---- glue: NHWC im2col (avoids the big HBM transpose of the patch tensor) ----
    # Cast once to the compute dtype so every materialization below is half-width.
    x_nhwc = jnp.transpose(x, (0, 2, 3, 1)).astype(compute_dtype)      # (B,H,W,C)
    xp = jnp.pad(x_nhwc, ((0, 0), (pad, pad), (pad, pad), (0, 0)))
    cols = []
    for kh in range(k):
        for kw in range(k):
            cols.append(
                lax.slice(
                    xp,
                    (0, kh, kw, 0),
                    (B, kh + stride * (Ho - 1) + 1,
                     kw + stride * (Wo - 1) + 1, C),
                    (1, stride, stride, 1),
                ))                                                     # (B,Ho,Wo,C)
    if K_pad != K:
        cols.append(jnp.zeros((B, Ho, Wo, K_pad - K), dtype=compute_dtype))
    # K ordering is (kh, kw, c); last axis is already lane-dense so this
    # reshape is free (no relayout).
    patches = jnp.concatenate(cols, axis=-1).reshape(B * Ho * Wo, K_pad)

    # Weight matrix in the same (kh, kw, c) ordering, zero-padded to (K_pad, E_pad).
    w_mat = conv_w.transpose(2, 3, 1, 0).reshape(K, E)
    w_mat = jnp.pad(w_mat, ((0, K_pad - K), (0, E_pad - E))).astype(compute_dtype)

    # Fold conv bias + eval-mode BN into per-channel scale/shift (kept in f32).
    inv_std = 1.0 / jnp.sqrt(bn_var.astype(jnp.float32) + eps)
    scale = bn_gamma.astype(jnp.float32) * inv_std                     # (E,)
    shift = bn_beta.astype(jnp.float32) + (
        conv_b.astype(jnp.float32) - bn_mean.astype(jnp.float32)) * scale
    scale2d = jnp.pad(scale.reshape(1, E), ((0, 0), (0, E_pad - E)))
    shift2d = jnp.pad(shift.reshape(1, E), ((0, 0), (0, E_pad - E)))

    M = B * Ho * Wo
    tile_m_eff = min(_round_up(tile_m, 8), _round_up(M, 8))
    M_pad = _round_up(M, tile_m_eff)
    if M_pad != M:
        # Only triggers when M is not a multiple of the tile; for typical ViT
        # shapes this copy is skipped entirely.
        patches = jnp.pad(patches, ((0, M_pad - M), (0, 0)))

    grid = (M_pad // tile_m_eff,)

    csize = jnp.dtype(compute_dtype).itemsize
    flops = 2 * M_pad * K_pad * E_pad
    bytes_accessed = (M_pad * K_pad * csize + K_pad * E_pad * csize
                      + M_pad * E_pad * 4 + 2 * E_pad * 4)
    # Rough VMEM budget: double-buffered patch/output tiles + resident
    # weight/scale/shift; clamp to 64 MiB so large tiles still fit v7x.
    vmem_est = (2 * (tile_m_eff * K_pad * csize + tile_m_eff * E_pad * 4)
                + 2 * (K_pad * E_pad * csize + 2 * E_pad * 4))
    vmem_limit = int(min(max(2 * vmem_est, 32 * 2 ** 20), 64 * 2 ** 20))

    out_mat = pl.pallas_call(
        _conv_bn_kernel,
        out_shape=jax.ShapeDtypeStruct((M_pad, E_pad), jnp.float32),
        grid_spec=pltpu.PrefetchScalarGridSpec(
            num_scalar_prefetch=0,
            grid=grid,
            in_specs=[
                pl.BlockSpec((tile_m_eff, K_pad), lambda i: (i, 0)),   # patch tile
                pl.BlockSpec((K_pad, E_pad), lambda i: (0, 0)),        # full weight
                pl.BlockSpec((1, E_pad), lambda i: (0, 0)),            # BN scale
                pl.BlockSpec((1, E_pad), lambda i: (0, 0)),            # BN shift
            ],
            out_specs=pl.BlockSpec((tile_m_eff, E_pad), lambda i: (i, 0)),
        ),
        compiler_params=pltpu.CompilerParams(
            dimension_semantics=("parallel",),        # megacore-shardable on v7x
            vmem_limit_bytes=vmem_limit),
        cost_estimate=pl.CostEstimate(flops=flops, transcendentals=0,
                                      bytes_accessed=bytes_accessed),
    )(patches, w_mat, scale2d, shift2d)

    # Padded M rows equal `shift` and padded E cols are zero; both sliced off.
    out_nhwc = out_mat[:M, :E].reshape(B, Ho, Wo, E)
    if channels_last:
        # Cheaper for downstream consumers that take NHWC: skips a full HBM
        # relayout of the output.
        return out_nhwc, (Ho, Wo)
    # NCHW to match the PyTorch module's output layout.
    return jnp.transpose(out_nhwc, (0, 3, 1, 2)), (Ho, Wo)


def _reference(x, conv_w, conv_b, bn_gamma, bn_beta, bn_mean, bn_var,
               *, stride=2, eps=1e-5):
    """Pure-JAX reference (lax.conv + eval-mode BN) for correctness checks."""
    y = lax.conv_general_dilated(
        x, conv_w, window_strides=(stride, stride), padding=((1, 1), (1, 1)),
        dimension_numbers=("NCHW", "OIHW", "NCHW"))
    y = y + conv_b[None, :, None, None]
    inv_std = 1.0 / jnp.sqrt(bn_var + eps)
    y = (y - bn_mean[None, :, None, None]) * (bn_gamma * inv_std)[None, :, None, None] \
        + bn_beta[None, :, None, None]
    return y


if __name__ == "__main__":
    key = jax.random.PRNGKey(0)
    kx, kw, kb, kg, kbe, km, kv = jax.random.split(key, 7)

    B, C, H, W = 2, 4, 16, 16
    E = 32
    ksize, stride = 3, 2

    x = jax.random.normal(kx, (B, C, H, W), dtype=jnp.float32)
    conv_w = jax.random.normal(kw, (E, C, ksize, ksize), dtype=jnp.float32) * 0.1
    conv_b = jax.random.normal(kb, (E,), dtype=jnp.float32) * 0.1
    bn_gamma = 1.0 + 0.1 * jax.random.normal(kg, (E,), dtype=jnp.float32)
    bn_beta = 0.1 * jax.random.normal(kbe, (E,), dtype=jnp.float32)
    bn_mean = 0.1 * jax.random.normal(km, (E,), dtype=jnp.float32)
    bn_var = jnp.abs(jax.random.normal(kv, (E,), dtype=jnp.float32)) + 0.5

    ref = _reference(x, conv_w, conv_b, bn_gamma, bn_beta, bn_mean, bn_var,
                     stride=stride)

    # 1) f32 compute path: tight correctness check against the lax.conv reference.
    fwd_f32 = jax.jit(functools.partial(conv_patch_embed, kernel_size=ksize,
                                        stride=stride, compute_dtype=jnp.float32))
    out32, out_size = fwd_f32(x, conv_w, conv_b, bn_gamma, bn_beta, bn_mean, bn_var)
    out32 = jax.block_until_ready(out32)
    assert out32.shape == (B, E, H // stride, W // stride), out32.shape
    assert out_size == (H // stride, W // stride), out_size
    assert jnp.allclose(out32, ref, atol=1e-4, rtol=1e-4), \
        float(jnp.max(jnp.abs(out32 - ref)))

    # 2) bf16 compute path (the default, bandwidth-optimized one): bf16 tolerance.
    fwd_bf16 = jax.jit(functools.partial(conv_patch_embed, kernel_size=ksize,
                                         stride=stride))
    out16, out_size16 = fwd_bf16(x, conv_w, conv_b, bn_gamma, bn_beta, bn_mean, bn_var)
    out16 = jax.block_until_ready(out16)
    assert out16.shape == (B, E, H // stride, W // stride), out16.shape
    assert out_size16 == (H // stride, W // stride), out_size16
    assert jnp.allclose(out16, ref, atol=3e-2, rtol=3e-2), \
        float(jnp.max(jnp.abs(out16 - ref)))

    print("KERNEL_OK")
</pallas_src>

<mosaic_0001>
module attributes {stable_mosaic.version = 11 : i64} {
  func.func @_conv_bn_kernel(%arg0: i32, %arg1: memref<128x40xf32, #tpu.memory_space<vmem>>, %arg2: memref<40x128xf32, #tpu.memory_space<vmem>>, %arg3: memref<1x128xf32, #tpu.memory_space<vmem>>, %arg4: memref<1x128xf32, #tpu.memory_space<vmem>>, %arg5: memref<128x128xf32, #tpu.memory_space<vmem>>) attributes {dimension_semantics = [#tpu.dimension_semantics<parallel>], iteration_bounds = array<i64: 1>, scalar_prefetch = 0 : i64, scratch_operands = 0 : i64, tpu.core_type = #tpu.core_type<tc>, window_params = [{transform_indices = @transform_0, window_bounds = array<i64: 128, 40>}, {pipeline_mode = #tpu.pipeline_mode<synchronous>, transform_indices = @transform_1, window_bounds = array<i64: 40, 128>}, {pipeline_mode = #tpu.pipeline_mode<synchronous>, transform_indices = @transform_2, window_bounds = array<i64: 1, 128>}, {pipeline_mode = #tpu.pipeline_mode<synchronous>, transform_indices = @transform_3, window_bounds = array<i64: 1, 128>}, {transform_indices = @transform_4, window_bounds = array<i64: 128, 128>}]} {
    %c0 = arith.constant 0 : index
    %c0_0 = arith.constant 0 : index
    %0 = vector.load %arg1[%c0, %c0_0] : memref<128x40xf32, #tpu.memory_space<vmem>>, vector<128x40xf32>
    %c0_1 = arith.constant 0 : index
    %c0_2 = arith.constant 0 : index
    %1 = vector.load %arg2[%c0_1, %c0_2] : memref<40x128xf32, #tpu.memory_space<vmem>>, vector<40x128xf32>
    %cst = arith.constant dense<0.000000e+00> : vector<128x128xf32>
    %2 = tpu.matmul %0, %1, %cst {dimension_numbers = #tpu.dot_dimension_numbers<[1], [0], [0], [1], [0, 0, 1, 1], [], []>} : vector<128x40xf32>, vector<40x128xf32>, vector<128x128xf32> -> vector<128x128xf32>
    %c0_3 = arith.constant 0 : index
    %c0_4 = arith.constant 0 : index
    %3 = vector.load %arg3[%c0_3, %c0_4] : memref<1x128xf32, #tpu.memory_space<vmem>>, vector<1x128xf32>
    %4 = vector.broadcast %3 : vector<1x128xf32> to vector<128x128xf32>
    %5 = arith.mulf %2, %4 : vector<128x128xf32>
    %c0_5 = arith.constant 0 : index
    %c0_6 = arith.constant 0 : index
    %6 = vector.load %arg4[%c0_5, %c0_6] : memref<1x128xf32, #tpu.memory_space<vmem>>, vector<1x128xf32>
    %7 = vector.broadcast %6 : vector<1x128xf32> to vector<128x128xf32>
    %8 = arith.addf %5, %7 : vector<128x128xf32>
    %c0_7 = arith.constant 0 : index
    %c0_8 = arith.constant 0 : index
    %9 = vector.load %arg5[%c0_7, %c0_8] : memref<128x128xf32, #tpu.memory_space<vmem>>, vector<128x128xf32>
    tpu.vector_store %arg5[%c0_7, %c0_8], %8 {strides = array<i32>} : memref<128x128xf32, #tpu.memory_space<vmem>>, vector<128x128xf32>,
    return
  }
  func.func @transform_0(%arg0: i32) -> (i32, i32) {
    %c0_i32 = arith.constant 0 : i32
    %c0_i32_0 = arith.constant 0 : i32
    return %arg0, %c0_i32 : i32, i32
  }
  func.func @transform_1(%arg0: i32) -> (i32, i32) {
    %c0_i32 = arith.constant 0 : i32
    %c0_i32_0 = arith.constant 0 : i32
    %c0_i32_1 = arith.constant 0 : i32
    return %c0_i32, %c0_i32_0 : i32, i32
  }
  func.func @transform_2(%arg0: i32) -> (i32, i32) {
    %c0_i32 = arith.constant 0 : i32
    %c0_i32_0 = arith.constant 0 : i32
    %c0_i32_1 = arith.constant 0 : i32
    return %c0_i32, %c0_i32_0 : i32, i32
  }
  func.func @transform_3(%arg0: i32) -> (i32, i32) {
    %c0_i32 = arith.constant 0 : i32
    %c0_i32_0 = arith.constant 0 : i32
    %c0_i32_1 = arith.constant 0 : i32
    return %c0_i32, %c0_i32_0 : i32, i32
  }
  func.func @transform_4(%arg0: i32) -> (i32, i32) {
    %c0_i32 = arith.constant 0 : i32
    %c0_i32_0 = arith.constant 0 : i32
    return %arg0, %c0_i32 : i32, i32
  }
}

</mosaic_0001>

<llo_original>
// kernel: conv_patch_embed.1
$region0: #{conv_patch_embed.1}
  #allocation0 [shape = 'u32[]', space=smem, size = 0x4, offset = 0x4, fixed_abs, tag = 'smem constant byte address 0x4 - core index']
  #allocation1 [shape = 'u32[144,128]{1,0:T(1,128)}', space=vmem, size = 0x12000, scoped, tag = 'internal scratch']
  %s0 = inlined_call_operand.vmem [shape: f32[128,40], index: 0, kind: input, shape index: {}]
  %s1 = inlined_call_operand.vmem [shape: f32[40,128], index: 1, kind: input, shape index: {}]
  %s2 = inlined_call_operand.vmem [shape: f32[1,128], index: 2, kind: input, shape index: {}]
  %s3 = inlined_call_operand.vmem [shape: f32[1,128], index: 3, kind: input, shape index: {}]
  %s4 = inlined_call_operand.hbm [shape: f32[128,128], index: 4, kind: output, shape index: {}]
  %s5 = sld [smem:[#allocation0]]
  $region26: #{conv_patch_embed.1} parent=0
    _
  %s7 = ssub.s32 1, %s5
  %s8 = scalar_select 0, %s7, %s5
  $region1: #{conv_patch_embed.1} parent=0
    #allocation2 [shape = 'u8[65536]{0}', space=vmem, size = 0x10000, scoped, tag = 'output window, operand 0, single buffered']
    #allocation3 [shape = 's32[1]{0}', space=sflag, size = 0x4, scoped, tag = 'scoped memory for conv_patch_embed.1']
    %9 = vsyncpa [#allocation3], 0
    // Predicated region
    $region2: #{conv_patch_embed.1} parent=1 // pred_check
      _
    $region3: #{conv_patch_embed.1} parent=1 // pred_check_branch
      %11 = sbr.rel (0) target = $region5
    $region4: #{conv_patch_embed.1} parent=1 // pred_region
      _
    $region5: #{conv_patch_embed.1} parent=1 // pred_fallthru
      _
    // Predicated region
    $region6: #{conv_patch_embed.1} parent=1 // pred_check
      _
    $region7: #{conv_patch_embed.1} parent=1 // pred_check_branch
      %13 = sbr.rel (0) target = $region9
    $region8: #{conv_patch_embed.1} parent=1 // pred_region
      _
    $region9: #{conv_patch_embed.1} parent=1 // pred_fallthru
      _
    // Predicated region
    $region10: #{conv_patch_embed.1} parent=1 // pred_check
      _
    $region11: #{conv_patch_embed.1} parent=1 // pred_check_branch
      %15 = sbr.rel (0) target = $region13
    $region12: #{conv_patch_embed.1} parent=1 // pred_region
      _
    $region13: #{conv_patch_embed.1} parent=1 // pred_fallthru
      _
    // Predicated region
    $region14: #{conv_patch_embed.1} parent=1 // pred_check
      _
    $region15: #{conv_patch_embed.1} parent=1 // pred_check_branch
      %17 = sbr.rel (0) target = $region17
    $region16: #{conv_patch_embed.1} parent=1 // pred_region
      _
    $region17: #{conv_patch_embed.1} parent=1 // pred_fallthru
      _
    %v18 = vld [vmem:[%s0] sm:$0xff]
    %v19 = vld [vmem:[%s0 + $0x8] sm:$0xff]
    %v20 = vld [vmem:[%s0 + $0x10] sm:$0xff]
    %v21 = vld [vmem:[%s0 + $0x18] sm:$0xff]
    %v22 = vld [vmem:[%s0 + $0x20] sm:$0xff]
    %v23 = vld [vmem:[%s0 + $0x28] sm:$0xff]
    %v24 = vld [vmem:[%s0 + $0x30] sm:$0xff]
    %v25 = vld [vmem:[%s0 + $0x38] sm:$0xff]
    %v26 = vld [vmem:[%s0 + $0x40] sm:$0xff]
    %v27 = vld [vmem:[%s0 + $0x48] sm:$0xff]
    %v28 = vld [vmem:[%s0 + $0x50] sm:$0xff]
    %v29 = vld [vmem:[%s0 + $0x58] sm:$0xff]
    %v30 = vld [vmem:[%s0 + $0x60] sm:$0xff]
    %v31 = vld [vmem:[%s0 + $0x68] sm:$0xff]
    %v32 = vld [vmem:[%s0 + $0x70] sm:$0xff]
    %v33 = vld [vmem:[%s0 + $0x78] sm:$0xff]
    %v34 = vld [vmem:[%s1] sm:$0xff]
    %v35 = vld [vmem:[%s1 + $0x8] sm:$0xff]
    %v36 = vld [vmem:[%s1 + $0x10] sm:$0xff]
    %v37 = vld [vmem:[%s1 + $0x18] sm:$0xff]
    %v38 = vld [vmem:[%s1 + $0x20] sm:$0xff]
    %vm39 = vcmask 326656
    %v41 = vsel %vm39, %v18, 0
    %v44 = vsel %vm39, %v19, 0
    %v47 = vsel %vm39, %v20, 0
    %v50 = vsel %vm39, %v21, 0
    %v53 = vsel %vm39, %v22, 0
    %v56 = vsel %vm39, %v23, 0
    %v59 = vsel %vm39, %v24, 0
    %v62 = vsel %vm39, %v25, 0
    %v65 = vsel %vm39, %v26, 0
    %v68 = vsel %vm39, %v27, 0
    %v71 = vsel %vm39, %v28, 0
    %v74 = vsel %vm39, %v29, 0
    %v77 = vsel %vm39, %v30, 0
    %v80 = vsel %vm39, %v31, 0
    %v83 = vsel %vm39, %v32, 0
    %v86 = vsel %vm39, %v33, 0
    %88 = vmatprep.subr.mxu0 0.0
    %89 = vmatpush1.msra.mxu0 %v34
    %90 = vmatprep.subr.mxu0 0.0
    %91 = vmatpush1.msra.mxu0 %v35
    %92 = vmatprep.subr.mxu0 0.0
    %93 = vmatpush1.msra.mxu0 %v36
    %94 = vmatprep.subr.mxu0 0.0
    %95 = vmatpush1.msra.mxu0 %v37
    %96 = vmatprep.subr.mxu0 0.0
    %97 = vmatpush1.msra.mxu0 %v38
    %98 = vmatprep.subr.mxu0 0.0
    %99 = vmatpush1.msra.mxu0 0.0
    %100 = vmatprep.subr.mxu0 0.0
    %101 = vmatpush1.msra.mxu0 0.0
    %102 = vmatprep.subr.mxu0 0.0
    %103 = vmatpush1.msra.mxu0 0.0
    %104 = vmatprep.subr.mxu0 0.0
    %105 = vmatpush1.msra.mxu0 0.0
    %106 = vmatprep.subr.mxu0 0.0
    %107 = vmatpush1.msra.mxu0 0.0
    %108 = vmatprep.subr.mxu0 0.0
    %109 = vmatpush1.msra.mxu0 0.0
    %110 = vmatprep.subr.mxu0 0.0
    %111 = vmatpush1.msra.mxu0 0.0
    %112 = vmatprep.subr.mxu0 0.0
    %113 = vmatpush1.msra.mxu0 0.0
    %114 = vmatprep.subr.mxu0 0.0
    %115 = vmatpush1.msra.mxu0 0.0
    %116 = vmatprep.subr.mxu0 0.0
    %117 = vmatpush1.msra.mxu0 0.0
    %118 = vmatprep.subr.mxu0 0.0
    %119 = vmatpush1.msra.mxu0 0.0
    %120 = vmatprep.subr.mxu0 0.0
    %121 = vmatpush1.msra.mxu0 0.0
    %122 = vmatprep.subr.mxu0 0.0
    %123 = vmatpush1.msra.mxu0 0.0
    %124 = vmatprep.subr.mxu0 0.0
    %125 = vmatpush1.msra.mxu0 0.0
    %126 = vmatprep.subr.mxu0 0.0
    %127 = vmatpush1.msra.mxu0 0.0
    %128 = vmatprep.subr.mxu0 0.0
    %129 = vmatpush1.msra.mxu0 0.0
    %130 = vmatprep.subr.mxu0 0.0
    %131 = vmatpush1.msra.mxu0 0.0
    %132 = vmatprep.subr.mxu0 0.0
    %133 = vmatpush1.msra.mxu0 0.0
    %134 = vmatprep.subr.mxu0 0.0
    %135 = vmatpush1.msra.mxu0 0.0
    %136 = vmatprep.subr.mxu0 0.0
    %137 = vmatpush1.msra.mxu0 0.0
    %138 = vmatprep.subr.mxu0 0.0
    %139 = vmatpush1.msra.mxu0 0.0
    %140 = vmatprep.subr.mxu0 0.0
    %141 = vmatpush1.msra.mxu0 0.0
    %142 = vmatprep.subr.mxu0 0.0
    %143 = vmatpush1.msra.mxu0 0.0
    %144 = vmatprep.subr.mxu0 0.0
    %145 = vmatpush1.msra.mxu0 0.0
    %146 = vmatprep.subr.mxu0 0.0
    %147 = vmatpush1.msra.mxu0 0.0
    %148 = vmatprep.subr.mxu0 0.0
    %149 = vmatpush1.msra.mxu0 0.0
    %150 = vmatprep.subr.mxu0 0.0
    %151 = vmatpush1.msra.mxu0 0.0
    %152 = vmatprep.mubr.f32.mxu0 0.0
    %153 = vmatmul.mubr.f32.gmra.mrb[0].mxu0 %v41
    %v154 = vpop.f32.mrb[0].mxu0
    %v155 = vadd.f32 0.0, %v154
    %v156 = vpop.f32.mrb[0].mxu0
    %157 = vmatprep.mubr.f32.mxu0 0.0
    %158 = vmatmul.mubr.f32.gmra.mrb[0].mxu0 %v44
    %v159 = vpop.f32.mrb[0].mxu0
    %v160 = vadd.f32 0.0, %v159
    %v161 = vpop.f32.mrb[0].mxu0
    %162 = vmatprep.mubr.f32.mxu0 0.0
    %163 = vmatmul.mubr.f32.gmra.mrb[0].mxu0 %v47
    %v164 = vpop.f32.mrb[0].mxu0
    %v165 = vadd.f32 0.0, %v164
    %v166 = vpop.f32.mrb[0].mxu0
    %167 = vmatprep.mubr.f32.mxu0 0.0
    %168 = vmatmul.mubr.f32.gmra.mrb[0].mxu0 %v50
    %v169 = vpop.f32.mrb[0].mxu0
    %v170 = vadd.f32 0.0, %v169
    %v171 = vpop.f32.mrb[0].mxu0
    %172 = vmatprep.mubr.f32.mxu0 0.0
    %173 = vmatmul.mubr.f32.gmra.mrb[0].mxu0 %v53
    %v174 = vpop.f32.mrb[0].mxu0
    %v175 = vadd.f32 0.0, %v174
    %v176 = vpop.f32.mrb[0].mxu0
    %177 = vmatprep.mubr.f32.mxu0 0.0
    %178 = vmatmul.mubr.f32.gmra.mrb[0].mxu0 %v56
    %v179 = vpop.f32.mrb[0].mxu0
    %v180 = vadd.f32 0.0, %v179
    %v181 = vpop.f32.mrb[0].mxu0
    %182 = vmatprep.mubr.f32.mxu0 0.0
    %183 = vmatmul.mubr.f32.gmra.mrb[0].mxu0 %v59
    %v184 = vpop.f32.mrb[0].mxu0
    %v185 = vadd.f32 0.0, %v184
    %v186 = vpop.f32.mrb[0].mxu0
    %187 = vmatprep.mubr.f32.mxu0 0.0
    %188 = vmatmul.mubr.f32.gmra.mrb[0].mxu0 %v62
    %v189 = vpop.f32.mrb[0].mxu0
    %v190 = vadd.f32 0.0, %v189
    %v191 = vpop.f32.mrb[0].mxu0
    %192 = vmatprep.mubr.f32.mxu0 0.0
    %193 = vmatmul.mubr.f32.gmra.mrb[0].mxu0 %v65
    %v194 = vpop.f32.mrb[0].mxu0
    %v195 = vadd.f32 0.0, %v194
    %v196 = vpop.f32.mrb[0].mxu0
    %197 = vmatprep.mubr.f32.mxu0 0.0
    %198 = vmatmul.mubr.f32.gmra.mrb[0].mxu0 %v68
    %v199 = vpop.f32.mrb[0].mxu0
    %v200 = vadd.f32 0.0, %v199
    %v201 = vpop.f32.mrb[0].mxu0
    %202 = vmatprep.mubr.f32.mxu0 0.0
    %203 = vmatmul.mubr.f32.gmra.mrb[0].mxu0 %v71
    %v204 = vpop.f32.mrb[0].mxu0
    %v205 = vadd.f32 0.0, %v204
    %v206 = vpop.f32.mrb[0].mxu0
    %207 = vmatprep.mubr.f32.mxu0 0.0
    %208 = vmatmul.mubr.f32.gmra.mrb[0].mxu0 %v74
    %v209 = vpop.f32.mrb[0].mxu0
    %v210 = vadd.f32 0.0, %v209
    %v211 = vpop.f32.mrb[0].mxu0
    %212 = vmatprep.mubr.f32.mxu0 0.0
    %213 = vmatmul.mubr.f32.gmra.mrb[0].mxu0 %v77
    %v214 = vpop.f32.mrb[0].mxu0
    %v215 = vadd.f32 0.0, %v214
    %v216 = vpop.f32.mrb[0].mxu0
    %217 = vmatprep.mubr.f32.mxu0 0.0
    %218 = vmatmul.mubr.f32.gmra.mrb[0].mxu0 %v80
    %v219 = vpop.f32.mrb[0].mxu0
    %v220 = vadd.f32 0.0, %v219
    %v221 = vpop.f32.mrb[0].mxu0
    %222 = vmatprep.mubr.f32.mxu0 0.0
    %223 = vmatmul.mubr.f32.gmra.mrb[0].mxu0 %v83
    %v224 = vpop.f32.mrb[0].mxu0
    %v225 = vadd.f32 0.0, %v224
    %v226 = vpop.f32.mrb[0].mxu0
    %227 = vmatprep.mubr.f32.mxu0 0.0
    %228 = vmatmul.mubr.f32.gmra.mrb[0].mxu0 %v86
    %v229 = vpop.f32.mrb[0].mxu0
    %v230 = vadd.f32 0.0, %v229
    %v231 = vpop.f32.mrb[0].mxu0
    %232 = vdwg.mxu0
    %v233 = vld [vmem:[%s2] sm:$0x1]
    %v235 = vlaneseq
    %v236 = vshrl.u32 %v235, 7
    %v237 = vsub.s32 0, %v236
    %v238 = vrot.slane %v233, %v237
    %v240 = vmul.f32 %v155, %v238
    %v241 = vmul.f32 %v160, %v238
    %v242 = vmul.f32 %v165, %v238
    %v243 = vmul.f32 %v170, %v238
    %v244 = vmul.f32 %v175, %v238
    %v245 = vmul.f32 %v180, %v238
    %v246 = vmul.f32 %v185, %v238
    %v247 = vmul.f32 %v190, %v238
    %v248 = vmul.f32 %v195, %v238
    %v249 = vmul.f32 %v200, %v238
    %v250 = vmul.f32 %v205, %v238
    %v251 = vmul.f32 %v210, %v238
    %v252 = vmul.f32 %v215, %v238
    %v253 = vmul.f32 %v220, %v238
    %v254 = vmul.f32 %v225, %v238
    %v255 = vmul.f32 %v230, %v238
    %v256 = vld [vmem:[%s3] sm:$0x1]
    %v258 = vlaneseq
    %v259 = vshrl.u32 %v258, 7
    %v260 = vsub.s32 0, %v259
    %v261 = vrot.slane %v256, %v260
    %v263 = vadd.f32 %v240, %v261
    %v264 = vadd.f32 %v241, %v261
    %v265 = vadd.f32 %v242, %v261
    %v266 = vadd.f32 %v243, %v261
    %v267 = vadd.f32 %v244, %v261
    %v268 = vadd.f32 %v245, %v261
    %v269 = vadd.f32 %v246, %v261
    %v270 = vadd.f32 %v247, %v261
    %v271 = vadd.f32 %v248, %v261
    %v272 = vadd.f32 %v249, %v261
    %v273 = vadd.f32 %v250, %v261
    %v274 = vadd.f32 %v251, %v261
    %v275 = vadd.f32 %v252, %v261
    %v276 = vadd.f32 %v253, %v261
    %v277 = vadd.f32 %v254, %v261
    %v278 = vadd.f32 %v255, %v261
    %279 = vst [vmem:[#allocation2] sm:$0xff] %v263
    %280 = vst [vmem:[#allocation2 + $0x8] sm:$0xff] %v264
    %281 = vst [vmem:[#allocation2 + $0x10] sm:$0xff] %v265
    %282 = vst [vmem:[#allocation2 + $0x18] sm:$0xff] %v266
    %283 = vst [vmem:[#allocation2 + $0x20] sm:$0xff] %v267
    %284 = vst [vmem:[#allocation2 + $0x28] sm:$0xff] %v268
    %285 = vst [vmem:[#allocation2 + $0x30] sm:$0xff] %v269
    %286 = vst [vmem:[#allocation2 + $0x38] sm:$0xff] %v270
    %287 = vst [vmem:[#allocation2 + $0x40] sm:$0xff] %v271
    %288 = vst [vmem:[#allocation2 + $0x48] sm:$0xff] %v272
    %289 = vst [vmem:[#allocation2 + $0x50] sm:$0xff] %v273
    %290 = vst [vmem:[#allocation2 + $0x58] sm:$0xff] %v274
    %291 = vst [vmem:[#allocation2 + $0x60] sm:$0xff] %v275
    %292 = vst [vmem:[#allocation2 + $0x68] sm:$0xff] %v276
    %293 = vst [vmem:[#allocation2 + $0x70] sm:$0xff] %v277
    %294 = vst [vmem:[#allocation2 + $0x78] sm:$0xff] %v278
    // Predicated region
    $region18: #{conv_patch_embed.1} parent=1 // pred_check
      _
    $region19: #{conv_patch_embed.1} parent=1 // pred_check_branch
      %296 = sbr.rel (0) target = $region21
    $region20: #{conv_patch_embed.1} parent=1 // pred_region
      %s298 = ssub.s32 2048, 2048
      %299 = vsyncadd [#allocation3], %s298
      %s300 = sshll.u32 [#allocation2], 4
      %s301 = int_to_ptr.vmem [resolvable:$true] %s300
      %306 = dma.vmem_to_hbm [thread:$0]  %s301, 2048, %s4, [#allocation3], 128, 128, 8
    $region21: #{conv_patch_embed.1} parent=1 // pred_fallthru
      _
    // Predicated region
    $region22: #{conv_patch_embed.1} parent=1 // pred_check
      _
    $region23: #{conv_patch_embed.1} parent=1 // pred_check_branch
      %308 = sbr.rel (0) target = $region25
    $region24: #{conv_patch_embed.1} parent=1 // pred_region
      %309 = dma.done [#allocation3], 2048
    $region25: #{conv_patch_embed.1} parent=1 // pred_fallthru
      _
    %310 = vsyncpa [#allocation3], 1

</llo_original>
